<compile_context>
chip_gen: v5e
topology: v5e:2x2
jax: 0.10.0
libtpu: 0.0.40
codegen_flags: <defaults>
</compile_context>

<pallas_src>
import jax
import jax.numpy as jnp
from jax.experimental import pallas as pl
from jax.experimental.pallas import tpu as pltpu

# ---- model hyper-parameters (small, consistent with the module) ----
B       = 2    # batch
L       = 8    # sequence length (len_q == len_k == len_v)
D_MODEL = 32   # d_model
N_HEAD  = 4    # n_head
D_K     = 8    # d_k
D_V     = 8    # d_v
LN_EPS  = 1e-6


def mha_kernel(q_ref, k_ref, v_ref,
               wq_ref, wk_ref, wv_ref, wo_ref,
               gamma_ref, beta_ref,
               out_ref, attn_ref):
    """Fused MHA + residual + LayerNorm for the whole (B, L) problem in one grid step."""
    q2 = q_ref[...].reshape(B * L, D_MODEL)        # (16, 32)  leading-dim merge (free)
    k2 = k_ref[...].reshape(B * L, D_MODEL)
    v2 = v_ref[...].reshape(B * L, D_MODEL)

    # Head-batched projections: weights are (H, d_model, d_head) so no lane slicing.
    qb = jnp.broadcast_to(q2[None], (N_HEAD, B * L, D_MODEL))
    kb = jnp.broadcast_to(k2[None], (N_HEAD, B * L, D_MODEL))
    vb = jnp.broadcast_to(v2[None], (N_HEAD, B * L, D_MODEL))
    qp = jnp.einsum("hnm,hmd->hnd", qb, wq_ref[...],
                    preferred_element_type=jnp.float32)       # (H, B*L, d_k)  (pre-scaled)
    kp = jnp.einsum("hnm,hmd->hnd", kb, wk_ref[...],
                    preferred_element_type=jnp.float32)       # (H, B*L, d_k)
    vp = jnp.einsum("hnm,hmd->hnd", vb, wv_ref[...],
                    preferred_element_type=jnp.float32)       # (H, B*L, d_v)

    # (H, B*L, d) -> (H*B, L, d): sublane/major-aligned regrouping, no lane movement.
    qx = qp.reshape(N_HEAD * B, L, D_K)
    kx = kp.reshape(N_HEAD * B, L, D_K)
    vx = vp.reshape(N_HEAD * B, L, D_V)

    # Scaled dot-product attention, batched over the fused (head, batch) axis.
    s = jnp.einsum("xqd,xkd->xqk", qx, kx, preferred_element_type=jnp.float32)   # (H*B, L, L)
    s = s - jnp.max(s, axis=-1, keepdims=True)
    e = jnp.exp(s)
    a = e * pl.reciprocal(jnp.sum(e, axis=-1, keepdims=True), approx=True)
    attn_ref[...] = a.reshape(N_HEAD, B, L, L).astype(attn_ref.dtype)            # one store

    o = jnp.einsum("xqk,xkd->xqd", a, vx, preferred_element_type=jnp.float32)    # (H*B, L, d_v)
    o = o.reshape(N_HEAD, B * L, D_V)

    # Output projection == concat-heads @ W_fc, expressed as head-batched matmul + sum.
    t = jnp.einsum("hnd,hdm->hnm", o, wo_ref[...],
                   preferred_element_type=jnp.float32)                           # (H, B*L, d_model)
    y = jnp.sum(t, axis=0) + q2                                                  # residual from q

    # LayerNorm(d_model), eps = 1e-6, biased variance (matches nn.LayerNorm).
    mean = jnp.mean(y, axis=-1, keepdims=True)
    var = jnp.mean((y - mean) ** 2, axis=-1, keepdims=True)
    normed = (y - mean) * jax.lax.rsqrt(var + LN_EPS)
    out = normed * gamma_ref[...] + beta_ref[...]
    out_ref[...] = out.reshape(B, L, D_MODEL).astype(out_ref.dtype)              # one store


@jax.jit
def multi_head_attention(q, k, v, wqh, wkh, wvh, woh, gamma, beta):
    """q,k,v: (B, L, d_model). Per-head weights: wqh/wkh (H, d_model, d_k) [wqh pre-scaled
    by 1/sqrt(d_k)], wvh (H, d_model, d_v), woh (H, d_v, d_model). Returns (out, attn)."""
    Bsz, Lq, Dm = q.shape
    out_shapes = (
        jax.ShapeDtypeStruct((Bsz, Lq, Dm), q.dtype),               # output
        jax.ShapeDtypeStruct((N_HEAD, Bsz, Lq, Lq), jnp.float32),   # attention (head-major)
    )
    grid_spec = pltpu.PrefetchScalarGridSpec(
        num_scalar_prefetch=0,
        grid=(1,),                                                   # single fused step
        in_specs=[
            pl.BlockSpec((Bsz, Lq, Dm), lambda i: (0, 0, 0)),        # q
            pl.BlockSpec((Bsz, Lq, Dm), lambda i: (0, 0, 0)),        # k
            pl.BlockSpec((Bsz, Lq, Dm), lambda i: (0, 0, 0)),        # v
            pl.BlockSpec((N_HEAD, Dm, D_K), lambda i: (0, 0, 0)),    # wqh (pre-scaled)
            pl.BlockSpec((N_HEAD, Dm, D_K), lambda i: (0, 0, 0)),    # wkh
            pl.BlockSpec((N_HEAD, Dm, D_V), lambda i: (0, 0, 0)),    # wvh
            pl.BlockSpec((N_HEAD, D_V, Dm), lambda i: (0, 0, 0)),    # woh
            pl.BlockSpec((1, Dm), lambda i: (0, 0)),                 # layer_norm gamma
            pl.BlockSpec((1, Dm), lambda i: (0, 0)),                 # layer_norm beta
        ],
        out_specs=(
            pl.BlockSpec((Bsz, Lq, Dm), lambda i: (0, 0, 0)),
            pl.BlockSpec((N_HEAD, Bsz, Lq, Lq), lambda i: (0, 0, 0, 0)),
        ),
    )
    out, attn_hb = pl.pallas_call(
        mha_kernel,
        out_shape=out_shapes,
        grid_spec=grid_spec,
        compiler_params=pltpu.CompilerParams(dimension_semantics=("arbitrary",)),
    )(q, k, v, wqh, wkh, wvh, woh, gamma, beta)
    # head-major -> (B, H, L, L) outside the kernel (plain XLA transpose, cheap).
    return out, jnp.transpose(attn_hb, (1, 0, 2, 3))


def prepare_weights(w_qs, w_ks, w_vs, w_fc):
    """One-time host-side prep: split weights per head and fold 1/sqrt(d_k) into W_q."""
    scale = 1.0 / (D_K ** 0.5)
    wqh = jnp.transpose(w_qs.reshape(D_MODEL, N_HEAD, D_K), (1, 0, 2)) * scale   # (H, M, d_k)
    wkh = jnp.transpose(w_ks.reshape(D_MODEL, N_HEAD, D_K), (1, 0, 2))           # (H, M, d_k)
    wvh = jnp.transpose(w_vs.reshape(D_MODEL, N_HEAD, D_V), (1, 0, 2))           # (H, M, d_v)
    woh = w_fc.reshape(N_HEAD, D_V, D_MODEL)                                      # (H, d_v, M)
    return wqh, wkh, wvh, woh


def reference_mha(q, k, v, w_qs, w_ks, w_vs, w_fc, gamma, beta):
    """Plain-JAX reference mirroring the PyTorch forward (eval mode)."""
    Bsz, Lq, Dm = q.shape
    residual = q
    qp = (q @ w_qs).reshape(Bsz, Lq, N_HEAD, D_K).transpose(0, 2, 1, 3)
    kp = (k @ w_ks).reshape(Bsz, Lq, N_HEAD, D_K).transpose(0, 2, 1, 3)
    vp = (v @ w_vs).reshape(Bsz, Lq, N_HEAD, D_V).transpose(0, 2, 1, 3)
    attn = jnp.einsum("bhqd,bhkd->bhqk", qp / (D_K ** 0.5), kp)
    attn = jax.nn.softmax(attn, axis=-1)
    o = jnp.einsum("bhqk,bhkd->bhqd", attn, vp)
    o = o.transpose(0, 2, 1, 3).reshape(Bsz, Lq, N_HEAD * D_V)
    o = o @ w_fc + residual
    mean = jnp.mean(o, axis=-1, keepdims=True)
    var = jnp.mean((o - mean) ** 2, axis=-1, keepdims=True)
    o = (o - mean) / jnp.sqrt(var + LN_EPS) * gamma[0] + beta[0]
    return o, attn


if __name__ == "__main__":
    key = jax.random.PRNGKey(0)
    ks = jax.random.split(key, 8)

    # inputs
    q = jax.random.normal(ks[0], (B, L, D_MODEL), jnp.float32)
    k = jax.random.normal(ks[1], (B, L, D_MODEL), jnp.float32)
    v = jax.random.normal(ks[2], (B, L, D_MODEL), jnp.float32)

    # parameters (deterministic init; Linear weights stored as (in, out) = W.T)
    def init_w(k_, fan_in, fan_out):
        bound = 1.0 / (fan_in ** 0.5)
        return jax.random.uniform(k_, (fan_in, fan_out), jnp.float32, -bound, bound)

    w_qs = init_w(ks[3], D_MODEL, N_HEAD * D_K)
    w_ks = init_w(ks[4], D_MODEL, N_HEAD * D_K)
    w_vs = init_w(ks[5], D_MODEL, N_HEAD * D_V)
    w_fc = init_w(ks[6], N_HEAD * D_V, D_MODEL)
    gamma = jnp.ones((1, D_MODEL), jnp.float32)   # LayerNorm default weight
    beta = jnp.zeros((1, D_MODEL), jnp.float32)   # LayerNorm default bias

    # one-time host-side weight prep (per-head split + scale folding)
    wqh, wkh, wvh, woh = prepare_weights(w_qs, w_ks, w_vs, w_fc)

    out, attn = multi_head_attention(q, k, v, wqh, wkh, wvh, woh, gamma, beta)
    out = jax.block_until_ready(out)
    attn = jax.block_until_ready(attn)

    # correctness check against plain-JAX reference
    # (tolerance loosened to 5e-3 to accommodate the EUP approximate-reciprocal softmax)
    ref_out, ref_attn = reference_mha(q, k, v, w_qs, w_ks, w_vs, w_fc, gamma, beta)
    assert jnp.allclose(out, ref_out, atol=5e-3, rtol=5e-3), "output mismatch"
    assert jnp.allclose(attn, ref_attn, atol=5e-3, rtol=5e-3), "attn mismatch"

    print("KERNEL_OK")
</pallas_src>

<mosaic_0001>
module attributes {stable_mosaic.version = 11 : i64} {
  func.func @mha_kernel(%arg0: i32, %arg1: memref<2x8x32xf32, #tpu.memory_space<vmem>>, %arg2: memref<2x8x32xf32, #tpu.memory_space<vmem>>, %arg3: memref<2x8x32xf32, #tpu.memory_space<vmem>>, %arg4: memref<4x32x8xf32, #tpu.memory_space<vmem>>, %arg5: memref<4x32x8xf32, #tpu.memory_space<vmem>>, %arg6: memref<4x32x8xf32, #tpu.memory_space<vmem>>, %arg7: memref<4x8x32xf32, #tpu.memory_space<vmem>>, %arg8: memref<1x32xf32, #tpu.memory_space<vmem>>, %arg9: memref<1x32xf32, #tpu.memory_space<vmem>>, %arg10: memref<2x8x32xf32, #tpu.memory_space<vmem>>, %arg11: memref<4x2x8x8xf32, #tpu.memory_space<vmem>>) attributes {dimension_semantics = [#tpu.dimension_semantics<arbitrary>], iteration_bounds = array<i64: 1>, scalar_prefetch = 0 : i64, scratch_operands = 0 : i64, tpu.core_type = #tpu.core_type<tc>, window_params = [{pipeline_mode = #tpu.pipeline_mode<synchronous>, transform_indices = @transform_0, window_bounds = array<i64: 2, 8, 32>}, {pipeline_mode = #tpu.pipeline_mode<synchronous>, transform_indices = @transform_1, window_bounds = array<i64: 2, 8, 32>}, {pipeline_mode = #tpu.pipeline_mode<synchronous>, transform_indices = @transform_2, window_bounds = array<i64: 2, 8, 32>}, {pipeline_mode = #tpu.pipeline_mode<synchronous>, transform_indices = @transform_3, window_bounds = array<i64: 4, 32, 8>}, {pipeline_mode = #tpu.pipeline_mode<synchronous>, transform_indices = @transform_4, window_bounds = array<i64: 4, 32, 8>}, {pipeline_mode = #tpu.pipeline_mode<synchronous>, transform_indices = @transform_5, window_bounds = array<i64: 4, 32, 8>}, {pipeline_mode = #tpu.pipeline_mode<synchronous>, transform_indices = @transform_6, window_bounds = array<i64: 4, 8, 32>}, {pipeline_mode = #tpu.pipeline_mode<synchronous>, transform_indices = @transform_7, window_bounds = array<i64: 1, 32>}, {pipeline_mode = #tpu.pipeline_mode<synchronous>, transform_indices = @transform_8, window_bounds = array<i64: 1, 32>}, {pipeline_mode = #tpu.pipeline_mode<synchronous>, transform_indices = @transform_9, window_bounds = array<i64: 2, 8, 32>}, {pipeline_mode = #tpu.pipeline_mode<synchronous>, transform_indices = @transform_10, window_bounds = array<i64: 4, 2, 8, 8>}]} {
    %c0 = arith.constant 0 : index
    %c0_0 = arith.constant 0 : index
    %c0_1 = arith.constant 0 : index
    %0 = vector.load %arg1[%c0, %c0_0, %c0_1] : memref<2x8x32xf32, #tpu.memory_space<vmem>>, vector<2x8x32xf32>
    %1 = vector.shape_cast %0 : vector<2x8x32xf32> to vector<16x32xf32>
    %c0_2 = arith.constant 0 : index
    %c0_3 = arith.constant 0 : index
    %c0_4 = arith.constant 0 : index
    %2 = vector.load %arg2[%c0_2, %c0_3, %c0_4] : memref<2x8x32xf32, #tpu.memory_space<vmem>>, vector<2x8x32xf32>
    %3 = vector.shape_cast %2 : vector<2x8x32xf32> to vector<16x32xf32>
    %c0_5 = arith.constant 0 : index
    %c0_6 = arith.constant 0 : index
    %c0_7 = arith.constant 0 : index
    %4 = vector.load %arg3[%c0_5, %c0_6, %c0_7] : memref<2x8x32xf32, #tpu.memory_space<vmem>>, vector<2x8x32xf32>
    %5 = vector.shape_cast %4 : vector<2x8x32xf32> to vector<16x32xf32>
    %6 = vector.shape_cast %1 : vector<16x32xf32> to vector<1x16x32xf32>
    %7 = vector.shape_cast %6 : vector<1x16x32xf32> to vector<1x16x32xf32>
    %8 = vector.broadcast %7 : vector<1x16x32xf32> to vector<4x16x32xf32>
    %9 = vector.shape_cast %3 : vector<16x32xf32> to vector<1x16x32xf32>
    %10 = vector.shape_cast %9 : vector<1x16x32xf32> to vector<1x16x32xf32>
    %11 = vector.broadcast %10 : vector<1x16x32xf32> to vector<4x16x32xf32>
    %12 = vector.shape_cast %5 : vector<16x32xf32> to vector<1x16x32xf32>
    %13 = vector.shape_cast %12 : vector<1x16x32xf32> to vector<1x16x32xf32>
    %14 = vector.broadcast %13 : vector<1x16x32xf32> to vector<4x16x32xf32>
    %c0_8 = arith.constant 0 : index
    %c0_9 = arith.constant 0 : index
    %c0_10 = arith.constant 0 : index
    %15 = vector.load %arg4[%c0_8, %c0_9, %c0_10] : memref<4x32x8xf32, #tpu.memory_space<vmem>>, vector<4x32x8xf32>
    "tpu.trace_start"() <{level = 10 : i32, message = "hnm,hmd->hnd"}> : () -> ()
    %cst = arith.constant dense<0.000000e+00> : vector<4x16x8xf32>
    %16 = tpu.matmul %8, %15, %cst {dimension_numbers = #tpu.dot_dimension_numbers<[2], [1], [1], [2], [0, 0, 0, 1, 1, 2], [0], [0]>} : vector<4x16x32xf32>, vector<4x32x8xf32>, vector<4x16x8xf32> -> vector<4x16x8xf32>
    "tpu.trace_stop"() : () -> ()
    %c0_11 = arith.constant 0 : index
    %c0_12 = arith.constant 0 : index
    %c0_13 = arith.constant 0 : index
    %17 = vector.load %arg5[%c0_11, %c0_12, %c0_13] : memref<4x32x8xf32, #tpu.memory_space<vmem>>, vector<4x32x8xf32>
    "tpu.trace_start"() <{level = 10 : i32, message = "hnm,hmd->hnd"}> : () -> ()
    %cst_14 = arith.constant dense<0.000000e+00> : vector<4x16x8xf32>
    %18 = tpu.matmul %11, %17, %cst_14 {dimension_numbers = #tpu.dot_dimension_numbers<[2], [1], [1], [2], [0, 0, 0, 1, 1, 2], [0], [0]>} : vector<4x16x32xf32>, vector<4x32x8xf32>, vector<4x16x8xf32> -> vector<4x16x8xf32>
    "tpu.trace_stop"() : () -> ()
    %c0_15 = arith.constant 0 : index
    %c0_16 = arith.constant 0 : index
    %c0_17 = arith.constant 0 : index
    %19 = vector.load %arg6[%c0_15, %c0_16, %c0_17] : memref<4x32x8xf32, #tpu.memory_space<vmem>>, vector<4x32x8xf32>
    "tpu.trace_start"() <{level = 10 : i32, message = "hnm,hmd->hnd"}> : () -> ()
    %cst_18 = arith.constant dense<0.000000e+00> : vector<4x16x8xf32>
    %20 = tpu.matmul %14, %19, %cst_18 {dimension_numbers = #tpu.dot_dimension_numbers<[2], [1], [1], [2], [0, 0, 0, 1, 1, 2], [0], [0]>} : vector<4x16x32xf32>, vector<4x32x8xf32>, vector<4x16x8xf32> -> vector<4x16x8xf32>
    "tpu.trace_stop"() : () -> ()
    %21 = vector.shape_cast %16 : vector<4x16x8xf32> to vector<8x8x8xf32>
    %22 = vector.shape_cast %18 : vector<4x16x8xf32> to vector<8x8x8xf32>
    %23 = vector.shape_cast %20 : vector<4x16x8xf32> to vector<8x8x8xf32>
    "tpu.trace_start"() <{level = 10 : i32, message = "xqd,xkd->xqk"}> : () -> ()
    %cst_19 = arith.constant dense<0.000000e+00> : vector<8x8x8xf32>
    %24 = tpu.matmul %21, %22, %cst_19 {dimension_numbers = #tpu.dot_dimension_numbers<[2], [2], [1], [1], [0, 0, 0, 1, 1, 1], [0], [0]>} : vector<8x8x8xf32>, vector<8x8x8xf32>, vector<8x8x8xf32> -> vector<8x8x8xf32>
    "tpu.trace_stop"() : () -> ()
    %cst_20 = arith.constant dense<0xFF800000> : vector<8x8xf32>
    %25 = vector.multi_reduction <maximumf>, %24, %cst_20 [2] : vector<8x8x8xf32> to vector<8x8xf32>
    %26 = vector.shape_cast %25 : vector<8x8xf32> to vector<8x8x1xf32>
    %27 = vector.broadcast %26 : vector<8x8x1xf32> to vector<8x8x8xf32>
    %28 = arith.subf %24, %27 : vector<8x8x8xf32>
    %29 = math.exp %28 : vector<8x8x8xf32>
    %cst_21 = arith.constant dense<0.000000e+00> : vector<8x8xf32>
    %30 = vector.multi_reduction <add>, %29, %cst_21 [2] : vector<8x8x8xf32> to vector<8x8xf32>
    %31 = vector.shape_cast %30 : vector<8x8xf32> to vector<8x8x1xf32>
    %32 = tpu.reciprocal %31 {approx = true} : vector<8x8x1xf32> -> vector<8x8x1xf32>
    %33 = vector.broadcast %32 : vector<8x8x1xf32> to vector<8x8x8xf32>
    %34 = arith.mulf %29, %33 : vector<8x8x8xf32>
    %35 = vector.shape_cast %34 : vector<8x8x8xf32> to vector<4x2x8x8xf32>
    %c0_22 = arith.constant 0 : index
    %c0_23 = arith.constant 0 : index
    %c0_24 = arith.constant 0 : index
    %c0_25 = arith.constant 0 : index
    %36 = vector.load %arg11[%c0_22, %c0_23, %c0_24, %c0_25] : memref<4x2x8x8xf32, #tpu.memory_space<vmem>>, vector<4x2x8x8xf32>
    tpu.vector_store %arg11[%c0_22, %c0_23, %c0_24, %c0_25], %35 {strides = array<i32>} : memref<4x2x8x8xf32, #tpu.memory_space<vmem>>, vector<4x2x8x8xf32>,
    "tpu.trace_start"() <{level = 10 : i32, message = "xqk,xkd->xqd"}> : () -> ()
    %cst_26 = arith.constant dense<0.000000e+00> : vector<8x8x8xf32>
    %37 = tpu.matmul %34, %23, %cst_26 {dimension_numbers = #tpu.dot_dimension_numbers<[2], [1], [1], [2], [0, 0, 0, 1, 1, 2], [0], [0]>} : vector<8x8x8xf32>, vector<8x8x8xf32>, vector<8x8x8xf32> -> vector<8x8x8xf32>
    "tpu.trace_stop"() : () -> ()
    %38 = vector.shape_cast %37 : vector<8x8x8xf32> to vector<4x16x8xf32>
    %c0_27 = arith.constant 0 : index
    %c0_28 = arith.constant 0 : index
    %c0_29 = arith.constant 0 : index
    %39 = vector.load %arg7[%c0_27, %c0_28, %c0_29] : memref<4x8x32xf32, #tpu.memory_space<vmem>>, vector<4x8x32xf32>
    "tpu.trace_start"() <{level = 10 : i32, message = "hnd,hdm->hnm"}> : () -> ()
    %cst_30 = arith.constant dense<0.000000e+00> : vector<4x16x32xf32>
    %40 = tpu.matmul %38, %39, %cst_30 {dimension_numbers = #tpu.dot_dimension_numbers<[2], [1], [1], [2], [0, 0, 0, 1, 1, 2], [0], [0]>} : vector<4x16x8xf32>, vector<4x8x32xf32>, vector<4x16x32xf32> -> vector<4x16x32xf32>
    "tpu.trace_stop"() : () -> ()
    %cst_31 = arith.constant dense<0.000000e+00> : vector<16x32xf32>
    %41 = vector.multi_reduction <add>, %40, %cst_31 [0] : vector<4x16x32xf32> to vector<16x32xf32>
    %42 = arith.addf %41, %1 : vector<16x32xf32>
    %cst_32 = arith.constant dense<0.000000e+00> : vector<16xf32>
    %43 = vector.multi_reduction <add>, %42, %cst_32 [1] : vector<16x32xf32> to vector<16xf32>
    %44 = vector.shape_cast %43 : vector<16xf32> to vector<16x1xf32>
    %cst_33 = arith.constant 3.200000e+01 : f32
    %45 = vector.broadcast %cst_33 : f32 to vector<16x1xf32>
    %46 = arith.divf %44, %45 : vector<16x1xf32>
    %47 = vector.broadcast %46 : vector<16x1xf32> to vector<16x32xf32>
    %48 = arith.subf %42, %47 : vector<16x32xf32>
    %49 = arith.mulf %48, %48 : vector<16x32xf32>
    %cst_34 = arith.constant dense<0.000000e+00> : vector<16xf32>
    %50 = vector.multi_reduction <add>, %49, %cst_34 [1] : vector<16x32xf32> to vector<16xf32>
    %51 = vector.shape_cast %50 : vector<16xf32> to vector<16x1xf32>
    %cst_35 = arith.constant 3.200000e+01 : f32
    %52 = vector.broadcast %cst_35 : f32 to vector<16x1xf32>
    %53 = arith.divf %51, %52 : vector<16x1xf32>
    %54 = vector.broadcast %46 : vector<16x1xf32> to vector<16x32xf32>
    %55 = arith.subf %42, %54 : vector<16x32xf32>
    %cst_36 = arith.constant 9.99999997E-7 : f32
    %56 = vector.broadcast %cst_36 : f32 to vector<16x1xf32>
    %57 = arith.addf %53, %56 : vector<16x1xf32>
    %58 = math.rsqrt %57 : vector<16x1xf32>
    %59 = vector.broadcast %58 : vector<16x1xf32> to vector<16x32xf32>
    %60 = arith.mulf %55, %59 : vector<16x32xf32>
    %c0_37 = arith.constant 0 : index
    %c0_38 = arith.constant 0 : index
    %61 = vector.load %arg8[%c0_37, %c0_38] : memref<1x32xf32, #tpu.memory_space<vmem>>, vector<1x32xf32>
    %62 = vector.broadcast %61 : vector<1x32xf32> to vector<16x32xf32>
    %63 = arith.mulf %60, %62 : vector<16x32xf32>
    %c0_39 = arith.constant 0 : index
    %c0_40 = arith.constant 0 : index
    %64 = vector.load %arg9[%c0_39, %c0_40] : memref<1x32xf32, #tpu.memory_space<vmem>>, vector<1x32xf32>
    %65 = vector.broadcast %64 : vector<1x32xf32> to vector<16x32xf32>
    %66 = arith.addf %63, %65 : vector<16x32xf32>
    %67 = vector.shape_cast %66 : vector<16x32xf32> to vector<2x8x32xf32>
    %c0_41 = arith.constant 0 : index
    %c0_42 = arith.constant 0 : index
    %c0_43 = arith.constant 0 : index
    %68 = vector.load %arg10[%c0_41, %c0_42, %c0_43] : memref<2x8x32xf32, #tpu.memory_space<vmem>>, vector<2x8x32xf32>
    tpu.vector_store %arg10[%c0_41, %c0_42, %c0_43], %67 {strides = array<i32>} : memref<2x8x32xf32, #tpu.memory_space<vmem>>, vector<2x8x32xf32>,
    return
  }
  func.func @transform_0(%arg0: i32) -> (i32, i32, i32) {
    %c0_i32 = arith.constant 0 : i32
    %c0_i32_0 = arith.constant 0 : i32
    %c0_i32_1 = arith.constant 0 : i32
    %c0_i32_2 = arith.constant 0 : i32
    return %c0_i32, %c0_i32_0, %c0_i32_1 : i32, i32, i32
  }
  func.func @transform_1(%arg0: i32) -> (i32, i32, i32) {
    %c0_i32 = arith.constant 0 : i32
    %c0_i32_0 = arith.constant 0 : i32
    %c0_i32_1 = arith.constant 0 : i32
    %c0_i32_2 = arith.constant 0 : i32
    return %c0_i32, %c0_i32_0, %c0_i32_1 : i32, i32, i32
  }
  func.func @transform_2(%arg0: i32) -> (i32, i32, i32) {
    %c0_i32 = arith.constant 0 : i32
    %c0_i32_0 = arith.constant 0 : i32
    %c0_i32_1 = arith.constant 0 : i32
    %c0_i32_2 = arith.constant 0 : i32
    return %c0_i32, %c0_i32_0, %c0_i32_1 : i32, i32, i32
  }
  func.func @transform_3(%arg0: i32) -> (i32, i32, i32) {
    %c0_i32 = arith.constant 0 : i32
    %c0_i32_0 = arith.constant 0 : i32
    %c0_i32_1 = arith.constant 0 : i32
    %c0_i32_2 = arith.constant 0 : i32
    return %c0_i32, %c0_i32_0, %c0_i32_1 : i32, i32, i32
  }
  func.func @transform_4(%arg0: i32) -> (i32, i32, i32) {
    %c0_i32 = arith.constant 0 : i32
    %c0_i32_0 = arith.constant 0 : i32
    %c0_i32_1 = arith.constant 0 : i32
    %c0_i32_2 = arith.constant 0 : i32
    return %c0_i32, %c0_i32_0, %c0_i32_1 : i32, i32, i32
  }
  func.func @transform_5(%arg0: i32) -> (i32, i32, i32) {
    %c0_i32 = arith.constant 0 : i32
    %c0_i32_0 = arith.constant 0 : i32
    %c0_i32_1 = arith.constant 0 : i32
    %c0_i32_2 = arith.constant 0 : i32
    return %c0_i32, %c0_i32_0, %c0_i32_1 : i32, i32, i32
  }
  func.func @transform_6(%arg0: i32) -> (i32, i32, i32) {
    %c0_i32 = arith.constant 0 : i32
    %c0_i32_0 = arith.constant 0 : i32
    %c0_i32_1 = arith.constant 0 : i32
    %c0_i32_2 = arith.constant 0 : i32
    return %c0_i32, %c0_i32_0, %c0_i32_1 : i32, i32, i32
  }
  func.func @transform_7(%arg0: i32) -> (i32, i32) {
    %c0_i32 = arith.constant 0 : i32
    %c0_i32_0 = arith.constant 0 : i32
    %c0_i32_1 = arith.constant 0 : i32
    return %c0_i32, %c0_i32_0 : i32, i32
  }
  func.func @transform_8(%arg0: i32) -> (i32, i32) {
    %c0_i32 = arith.constant 0 : i32
    %c0_i32_0 = arith.constant 0 : i32
    %c0_i32_1 = arith.constant 0 : i32
    return %c0_i32, %c0_i32_0 : i32, i32
  }
  func.func @transform_9(%arg0: i32) -> (i32, i32, i32) {
    %c0_i32 = arith.constant 0 : i32
    %c0_i32_0 = arith.constant 0 : i32
    %c0_i32_1 = arith.constant 0 : i32
    %c0_i32_2 = arith.constant 0 : i32
    return %c0_i32, %c0_i32_0, %c0_i32_1 : i32, i32, i32
  }
  func.func @transform_10(%arg0: i32) -> (i32, i32, i32, i32) {
    %c0_i32 = arith.constant 0 : i32
    %c0_i32_0 = arith.constant 0 : i32
    %c0_i32_1 = arith.constant 0 : i32
    %c0_i32_2 = arith.constant 0 : i32
    %c0_i32_3 = arith.constant 0 : i32
    return %c0_i32, %c0_i32_0, %c0_i32_1, %c0_i32_2 : i32, i32, i32, i32
  }
}

</mosaic_0001>

<llo_original>
// kernel: multi_head_attention.1
$region0: #{multi_head_attention.1}
  #allocation0 [shape = 'u32[]', space=smem, size = 0x4, offset = 0x4, fixed_abs, tag = 'smem constant byte address 0x4 - core index']
  #allocation1 [shape = 'u32[72,128]{1,0:T(1,128)}', space=vmem, size = 0x9000, scoped, tag = 'internal scratch']
  %s0 = inlined_call_operand.vmem [shape: f32[2,8,32], index: 0, kind: input, shape index: {}]
  %s1 = inlined_call_operand.vmem [shape: f32[2,8,32], index: 1, kind: input, shape index: {}]
  %s2 = inlined_call_operand.vmem [shape: f32[2,8,32], index: 2, kind: input, shape index: {}]
  %s3 = inlined_call_operand.vmem [shape: f32[4,32,8], index: 3, kind: input, shape index: {}]
  %s4 = inlined_call_operand.vmem [shape: f32[4,32,8], index: 4, kind: input, shape index: {}]
  %s5 = inlined_call_operand.vmem [shape: f32[4,32,8], index: 5, kind: input, shape index: {}]
  %s6 = inlined_call_operand.vmem [shape: f32[4,8,32], index: 6, kind: input, shape index: {}]
  %s7 = inlined_call_operand.vmem [shape: f32[1,32], index: 7, kind: input, shape index: {}]
  %s8 = inlined_call_operand.vmem [shape: f32[1,32], index: 8, kind: input, shape index: {}]
  %s9 = inlined_call_operand.hbm [shape: f32[2,8,32], index: 9, kind: output, shape index: {0}]
  %s10 = inlined_call_operand.vmem [shape: f32[4,2,8,8], index: 10, kind: output, shape index: {1}]
  %11 = xla_tuple %s9, %s10
  %s12 = sld [smem:[#allocation0]]
  $region54: #{multi_head_attention.1} parent=0
    _
  %s14 = ssub.s32 1, %s12
  %s15 = scalar_select 0, %s14, %s12
  $region1: #{multi_head_attention.1} parent=0
    #allocation2 [shape = 'u8[8192]{0}', space=vmem, size = 0x2000, scoped, tag = 'output window, operand 0, single buffered']
    #allocation3 [shape = 's32[1]{0}', space=sflag, size = 0x4, scoped, tag = 'scoped memory for multi_head_attention.1']
    %16 = vsyncpa [#allocation3], 0
    // Predicated region
    $region2: #{multi_head_attention.1} parent=1 // pred_check
      _
    $region3: #{multi_head_attention.1} parent=1 // pred_check_branch
      %18 = sbr.rel (0) target = $region5
    $region4: #{multi_head_attention.1} parent=1 // pred_region
      _
    $region5: #{multi_head_attention.1} parent=1 // pred_fallthru
      _
    // Predicated region
    $region6: #{multi_head_attention.1} parent=1 // pred_check
      _
    $region7: #{multi_head_attention.1} parent=1 // pred_check_branch
      %20 = sbr.rel (0) target = $region9
    $region8: #{multi_head_attention.1} parent=1 // pred_region
      _
    $region9: #{multi_head_attention.1} parent=1 // pred_fallthru
      _
    // Predicated region
    $region10: #{multi_head_attention.1} parent=1 // pred_check
      _
    $region11: #{multi_head_attention.1} parent=1 // pred_check_branch
      %22 = sbr.rel (0) target = $region13
    $region12: #{multi_head_attention.1} parent=1 // pred_region
      _
    $region13: #{multi_head_attention.1} parent=1 // pred_fallthru
      _
    // Predicated region
    $region14: #{multi_head_attention.1} parent=1 // pred_check
      _
    $region15: #{multi_head_attention.1} parent=1 // pred_check_branch
      %24 = sbr.rel (0) target = $region17
    $region16: #{multi_head_attention.1} parent=1 // pred_region
      _
    $region17: #{multi_head_attention.1} parent=1 // pred_fallthru
      _
    // Predicated region
    $region18: #{multi_head_attention.1} parent=1 // pred_check
      _
    $region19: #{multi_head_attention.1} parent=1 // pred_check_branch
      %26 = sbr.rel (0) target = $region21
    $region20: #{multi_head_attention.1} parent=1 // pred_region
      _
    $region21: #{multi_head_attention.1} parent=1 // pred_fallthru
      _
    // Predicated region
    $region22: #{multi_head_attention.1} parent=1 // pred_check
      _
    $region23: #{multi_head_attention.1} parent=1 // pred_check_branch
      %28 = sbr.rel (0) target = $region25
    $region24: #{multi_head_attention.1} parent=1 // pred_region
      _
    $region25: #{multi_head_attention.1} parent=1 // pred_fallthru
      _
    // Predicated region
    $region26: #{multi_head_attention.1} parent=1 // pred_check
      _
    $region27: #{multi_head_attention.1} parent=1 // pred_check_branch
      %30 = sbr.rel (0) target = $region29
    $region28: #{multi_head_attention.1} parent=1 // pred_region
      _
    $region29: #{multi_head_attention.1} parent=1 // pred_fallthru
      _
    // Predicated region
    $region30: #{multi_head_attention.1} parent=1 // pred_check
      _
    $region31: #{multi_head_attention.1} parent=1 // pred_check_branch
      %32 = sbr.rel (0) target = $region33
    $region32: #{multi_head_attention.1} parent=1 // pred_region
      _
    $region33: #{multi_head_attention.1} parent=1 // pred_fallthru
      _
    // Predicated region
    $region34: #{multi_head_attention.1} parent=1 // pred_check
      _
    $region35: #{multi_head_attention.1} parent=1 // pred_check_branch
      %34 = sbr.rel (0) target = $region37
    $region36: #{multi_head_attention.1} parent=1 // pred_region
      _
    $region37: #{multi_head_attention.1} parent=1 // pred_fallthru
      _
    %v35 = vld [vmem:[%s0] sm:$0xff]
    %v36 = vld [vmem:[%s0 + $0x8] sm:$0xff]
    %v37 = vld [vmem:[%s1] sm:$0xff]
    %v38 = vld [vmem:[%s1 + $0x8] sm:$0xff]
    %v39 = vld [vmem:[%s2] sm:$0xff]
    %v40 = vld [vmem:[%s2 + $0x8] sm:$0xff]
    %v41 = vld [vmem:[%s3] sm:$0xff]
    %v42 = vld [vmem:[%s3 + $0x8] sm:$0xff]
    %v43 = vld [vmem:[%s3 + $0x10] sm:$0xff]
    %v44 = vld [vmem:[%s3 + $0x18] sm:$0xff]
    %v45 = vld [vmem:[%s3 + $0x20] sm:$0xff]
    %v46 = vld [vmem:[%s3 + $0x28] sm:$0xff]
    %v47 = vld [vmem:[%s3 + $0x30] sm:$0xff]
    %v48 = vld [vmem:[%s3 + $0x38] sm:$0xff]
    %v49 = vld [vmem:[%s3 + $0x40] sm:$0xff]
    %v50 = vld [vmem:[%s3 + $0x48] sm:$0xff]
    %v51 = vld [vmem:[%s3 + $0x50] sm:$0xff]
    %v52 = vld [vmem:[%s3 + $0x58] sm:$0xff]
    %v53 = vld [vmem:[%s3 + $0x60] sm:$0xff]
    %v54 = vld [vmem:[%s3 + $0x68] sm:$0xff]
    %v55 = vld [vmem:[%s3 + $0x70] sm:$0xff]
    %v56 = vld [vmem:[%s3 + $0x78] sm:$0xff]
    %vm57 = vcmask 261120
    %v59 = vsel %vm57, %v35, 0
    %v62 = vsel %vm57, %v36, 0
    %64 = vmatpush.msra.mxu0 0.0
    %65 = vmatpush.msra.mxu0 0.0
    %66 = vmatpush.msra.mxu0 0.0
    %67 = vmatpush.msra.mxu0 0.0
    %68 = vmatpush.msra.mxu0 0.0
    %69 = vmatpush.msra.mxu0 0.0
    %70 = vmatpush.msra.mxu0 0.0
    %71 = vmatpush.msra.mxu0 0.0
    %72 = vmatpush.msra.mxu0 0.0
    %73 = vmatpush.msra.mxu0 0.0
    %74 = vmatpush.msra.mxu0 0.0
    %75 = vmatpush.msra.mxu0 0.0
    %76 = vmatpush.msra.mxu0 %v44
    %77 = vmatpush.msra.mxu0 %v43
    %78 = vmatpush.msra.mxu0 %v42
    %79 = vmatpush.msra.mxu0 %v41
    %80 = vmatmul.f32.gmra.mxu0 %v59
    %v81 = vpop.f32.mrf.mxu0
    %v82 = vadd.f32 0.0, %v81
    %83 = vmatmul.f32.gmra.mxu0 %v62
    %v84 = vpop.f32.mrf.mxu0
    %v85 = vadd.f32 0.0, %v84
    %86 = vdwg.mxu0
    %87 = vmatpush.msra.mxu0 0.0
    %88 = vmatpush.msra.mxu0 0.0
    %89 = vmatpush.msra.mxu0 0.0
    %90 = vmatpush.msra.mxu0 0.0
    %91 = vmatpush.msra.mxu0 0.0
    %92 = vmatpush.msra.mxu0 0.0
    %93 = vmatpush.msra.mxu0 0.0
    %94 = vmatpush.msra.mxu0 0.0
    %95 = vmatpush.msra.mxu0 0.0
    %96 = vmatpush.msra.mxu0 0.0
    %97 = vmatpush.msra.mxu0 0.0
    %98 = vmatpush.msra.mxu0 0.0
    %99 = vmatpush.msra.mxu0 %v48
    %100 = vmatpush.msra.mxu0 %v47
    %101 = vmatpush.msra.mxu0 %v46
    %102 = vmatpush.msra.mxu0 %v45
    %103 = vmatmul.f32.gmra.mxu0 %v59
    %v104 = vpop.f32.mrf.mxu0
    %v105 = vadd.f32 0.0, %v104
    %106 = vmatmul.f32.gmra.mxu0 %v62
    %v107 = vpop.f32.mrf.mxu0
    %v108 = vadd.f32 0.0, %v107
    %109 = vdwg.mxu0
    %110 = vmatpush.msra.mxu0 0.0
    %111 = vmatpush.msra.mxu0 0.0
    %112 = vmatpush.msra.mxu0 0.0
    %113 = vmatpush.msra.mxu0 0.0
    %114 = vmatpush.msra.mxu0 0.0
    %115 = vmatpush.msra.mxu0 0.0
    %116 = vmatpush.msra.mxu0 0.0
    %117 = vmatpush.msra.mxu0 0.0
    %118 = vmatpush.msra.mxu0 0.0
    %119 = vmatpush.msra.mxu0 0.0
    %120 = vmatpush.msra.mxu0 0.0
    %121 = vmatpush.msra.mxu0 0.0
    %122 = vmatpush.msra.mxu0 %v52
    %123 = vmatpush.msra.mxu0 %v51
    %124 = vmatpush.msra.mxu0 %v50
    %125 = vmatpush.msra.mxu0 %v49
    %126 = vmatmul.f32.gmra.mxu0 %v59
    %v127 = vpop.f32.mrf.mxu0
    %v128 = vadd.f32 0.0, %v127
    %129 = vmatmul.f32.gmra.mxu0 %v62
    %v130 = vpop.f32.mrf.mxu0
    %v131 = vadd.f32 0.0, %v130
    %132 = vdwg.mxu0
    %133 = vmatpush.msra.mxu0 0.0
    %134 = vmatpush.msra.mxu0 0.0
    %135 = vmatpush.msra.mxu0 0.0
    %136 = vmatpush.msra.mxu0 0.0
    %137 = vmatpush.msra.mxu0 0.0
    %138 = vmatpush.msra.mxu0 0.0
    %139 = vmatpush.msra.mxu0 0.0
    %140 = vmatpush.msra.mxu0 0.0
    %141 = vmatpush.msra.mxu0 0.0
    %142 = vmatpush.msra.mxu0 0.0
    %143 = vmatpush.msra.mxu0 0.0
    %144 = vmatpush.msra.mxu0 0.0
    %145 = vmatpush.msra.mxu0 %v56
    %146 = vmatpush.msra.mxu0 %v55
    %147 = vmatpush.msra.mxu0 %v54
    %148 = vmatpush.msra.mxu0 %v53
    %149 = vmatmul.f32.gmra.mxu0 %v59
    %v150 = vpop.f32.mrf.mxu0
    %v151 = vadd.f32 0.0, %v150
    %152 = vmatmul.f32.gmra.mxu0 %v62
    %v153 = vpop.f32.mrf.mxu0
    %v154 = vadd.f32 0.0, %v153
    %155 = vdwg.mxu0
    %v156 = vld [vmem:[%s4] sm:$0xff]
    %v157 = vld [vmem:[%s4 + $0x8] sm:$0xff]
    %v158 = vld [vmem:[%s4 + $0x10] sm:$0xff]
    %v159 = vld [vmem:[%s4 + $0x18] sm:$0xff]
    %v160 = vld [vmem:[%s4 + $0x20] sm:$0xff]
    %v161 = vld [vmem:[%s4 + $0x28] sm:$0xff]
    %v162 = vld [vmem:[%s4 + $0x30] sm:$0xff]
    %v163 = vld [vmem:[%s4 + $0x38] sm:$0xff]
    %v164 = vld [vmem:[%s4 + $0x40] sm:$0xff]
    %v165 = vld [vmem:[%s4 + $0x48] sm:$0xff]
    %v166 = vld [vmem:[%s4 + $0x50] sm:$0xff]
    %v167 = vld [vmem:[%s4 + $0x58] sm:$0xff]
    %v168 = vld [vmem:[%s4 + $0x60] sm:$0xff]
    %v169 = vld [vmem:[%s4 + $0x68] sm:$0xff]
    %v170 = vld [vmem:[%s4 + $0x70] sm:$0xff]
    %v171 = vld [vmem:[%s4 + $0x78] sm:$0xff]
    %v173 = vsel %vm57, %v37, 0
    %v176 = vsel %vm57, %v38, 0
    %178 = vmatpush.msra.mxu0 0.0
    %179 = vmatpush.msra.mxu0 0.0
    %180 = vmatpush.msra.mxu0 0.0
    %181 = vmatpush.msra.mxu0 0.0
    %182 = vmatpush.msra.mxu0 0.0
    %183 = vmatpush.msra.mxu0 0.0
    %184 = vmatpush.msra.mxu0 0.0
    %185 = vmatpush.msra.mxu0 0.0
    %186 = vmatpush.msra.mxu0 0.0
    %187 = vmatpush.msra.mxu0 0.0
    %188 = vmatpush.msra.mxu0 0.0
    %189 = vmatpush.msra.mxu0 0.0
    %190 = vmatpush.msra.mxu0 %v159
    %191 = vmatpush.msra.mxu0 %v158
    %192 = vmatpush.msra.mxu0 %v157
    %193 = vmatpush.msra.mxu0 %v156
    %194 = vmatmul.f32.gmra.mxu0 %v173
    %v195 = vpop.f32.mrf.mxu0
    %v196 = vadd.f32 0.0, %v195
    %197 = vmatmul.f32.gmra.mxu0 %v176
    %v198 = vpop.f32.mrf.mxu0
    %v199 = vadd.f32 0.0, %v198
    %200 = vdwg.mxu0
    %201 = vmatpush.msra.mxu0 0.0
    %202 = vmatpush.msra.mxu0 0.0
    %203 = vmatpush.msra.mxu0 0.0
    %204 = vmatpush.msra.mxu0 0.0
    %205 = vmatpush.msra.mxu0 0.0
    %206 = vmatpush.msra.mxu0 0.0
    %207 = vmatpush.msra.mxu0 0.0
    %208 = vmatpush.msra.mxu0 0.0
    %209 = vmatpush.msra.mxu0 0.0
    %210 = vmatpush.msra.mxu0 0.0
    %211 = vmatpush.msra.mxu0 0.0
    %212 = vmatpush.msra.mxu0 0.0
    %213 = vmatpush.msra.mxu0 %v163
    %214 = vmatpush.msra.mxu0 %v162
    %215 = vmatpush.msra.mxu0 %v161
    %216 = vmatpush.msra.mxu0 %v160
    %217 = vmatmul.f32.gmra.mxu0 %v173
    %v218 = vpop.f32.mrf.mxu0
    %v219 = vadd.f32 0.0, %v218
    %220 = vmatmul.f32.gmra.mxu0 %v176
    %v221 = vpop.f32.mrf.mxu0
    %v222 = vadd.f32 0.0, %v221
    %223 = vdwg.mxu0
    %224 = vmatpush.msra.mxu0 0.0
    %225 = vmatpush.msra.mxu0 0.0
    %226 = vmatpush.msra.mxu0 0.0
    %227 = vmatpush.msra.mxu0 0.0
    %228 = vmatpush.msra.mxu0 0.0
    %229 = vmatpush.msra.mxu0 0.0
    %230 = vmatpush.msra.mxu0 0.0
    %231 = vmatpush.msra.mxu0 0.0
    %232 = vmatpush.msra.mxu0 0.0
    %233 = vmatpush.msra.mxu0 0.0
    %234 = vmatpush.msra.mxu0 0.0
    %235 = vmatpush.msra.mxu0 0.0
    %236 = vmatpush.msra.mxu0 %v167
    %237 = vmatpush.msra.mxu0 %v166
    %238 = vmatpush.msra.mxu0 %v165
    %239 = vmatpush.msra.mxu0 %v164
    %240 = vmatmul.f32.gmra.mxu0 %v173
    %v241 = vpop.f32.mrf.mxu0
    %v242 = vadd.f32 0.0, %v241
    %243 = vmatmul.f32.gmra.mxu0 %v176
    %v244 = vpop.f32.mrf.mxu0
    %v245 = vadd.f32 0.0, %v244
    %246 = vdwg.mxu0
    %247 = vmatpush.msra.mxu0 0.0
    %248 = vmatpush.msra.mxu0 0.0
    %249 = vmatpush.msra.mxu0 0.0
    %250 = vmatpush.msra.mxu0 0.0
    %251 = vmatpush.msra.mxu0 0.0
    %252 = vmatpush.msra.mxu0 0.0
    %253 = vmatpush.msra.mxu0 0.0
    %254 = vmatpush.msra.mxu0 0.0
    %255 = vmatpush.msra.mxu0 0.0
    %256 = vmatpush.msra.mxu0 0.0
    %257 = vmatpush.msra.mxu0 0.0
    %258 = vmatpush.msra.mxu0 0.0
    %259 = vmatpush.msra.mxu0 %v171
    %260 = vmatpush.msra.mxu0 %v170
    %261 = vmatpush.msra.mxu0 %v169
    %262 = vmatpush.msra.mxu0 %v168
    %263 = vmatmul.f32.gmra.mxu0 %v173
    %v264 = vpop.f32.mrf.mxu0
    %v265 = vadd.f32 0.0, %v264
    %266 = vmatmul.f32.gmra.mxu0 %v176
    %v267 = vpop.f32.mrf.mxu0
    %v268 = vadd.f32 0.0, %v267
    %269 = vdwg.mxu0
    %v270 = vld [vmem:[%s5] sm:$0xff]
    %v271 = vld [vmem:[%s5 + $0x8] sm:$0xff]
    %v272 = vld [vmem:[%s5 + $0x10] sm:$0xff]
    %v273 = vld [vmem:[%s5 + $0x18] sm:$0xff]
    %v274 = vld [vmem:[%s5 + $0x20] sm:$0xff]
    %v275 = vld [vmem:[%s5 + $0x28] sm:$0xff]
    %v276 = vld [vmem:[%s5 + $0x30] sm:$0xff]
    %v277 = vld [vmem:[%s5 + $0x38] sm:$0xff]
    %v278 = vld [vmem:[%s5 + $0x40] sm:$0xff]
    %v279 = vld [vmem:[%s5 + $0x48] sm:$0xff]
    %v280 = vld [vmem:[%s5 + $0x50] sm:$0xff]
    %v281 = vld [vmem:[%s5 + $0x58] sm:$0xff]
    %v282 = vld [vmem:[%s5 + $0x60] sm:$0xff]
    %v283 = vld [vmem:[%s5 + $0x68] sm:$0xff]
    %v284 = vld [vmem:[%s5 + $0x70] sm:$0xff]
    %v285 = vld [vmem:[%s5 + $0x78] sm:$0xff]
    %v287 = vsel %vm57, %v39, 0
    %v290 = vsel %vm57, %v40, 0
    %292 = vmatpush.msra.mxu0 0.0
    %293 = vmatpush.msra.mxu0 0.0
    %294 = vmatpush.msra.mxu0 0.0
    %295 = vmatpush.msra.mxu0 0.0
    %296 = vmatpush.msra.mxu0 0.0
    %297 = vmatpush.msra.mxu0 0.0
    %298 = vmatpush.msra.mxu0 0.0
    %299 = vmatpush.msra.mxu0 0.0
    %300 = vmatpush.msra.mxu0 0.0
    %301 = vmatpush.msra.mxu0 0.0
    %302 = vmatpush.msra.mxu0 0.0
    %303 = vmatpush.msra.mxu0 0.0
    %304 = vmatpush.msra.mxu0 %v273
    %305 = vmatpush.msra.mxu0 %v272
    %306 = vmatpush.msra.mxu0 %v271
    %307 = vmatpush.msra.mxu0 %v270
    %308 = vmatmul.f32.gmra.mxu0 %v287
    %v309 = vpop.f32.mrf.mxu0
    %v310 = vadd.f32 0.0, %v309
    %311 = vmatmul.f32.gmra.mxu0 %v290
    %v312 = vpop.f32.mrf.mxu0
    %v313 = vadd.f32 0.0, %v312
    %314 = vdwg.mxu0
    %315 = vmatpush.msra.mxu0 0.0
    %316 = vmatpush.msra.mxu0 0.0
    %317 = vmatpush.msra.mxu0 0.0
    %318 = vmatpush.msra.mxu0 0.0
    %319 = vmatpush.msra.mxu0 0.0
    %320 = vmatpush.msra.mxu0 0.0
    %321 = vmatpush.msra.mxu0 0.0
    %322 = vmatpush.msra.mxu0 0.0
    %323 = vmatpush.msra.mxu0 0.0
    %324 = vmatpush.msra.mxu0 0.0
    %325 = vmatpush.msra.mxu0 0.0
    %326 = vmatpush.msra.mxu0 0.0
    %327 = vmatpush.msra.mxu0 %v277
    %328 = vmatpush.msra.mxu0 %v276
    %329 = vmatpush.msra.mxu0 %v275
    %330 = vmatpush.msra.mxu0 %v274
    %331 = vmatmul.f32.gmra.mxu0 %v287
    %v332 = vpop.f32.mrf.mxu0
    %v333 = vadd.f32 0.0, %v332
    %334 = vmatmul.f32.gmra.mxu0 %v290
    %v335 = vpop.f32.mrf.mxu0
    %v336 = vadd.f32 0.0, %v335
    %337 = vdwg.mxu0
    %338 = vmatpush.msra.mxu0 0.0
    %339 = vmatpush.msra.mxu0 0.0
    %340 = vmatpush.msra.mxu0 0.0
    %341 = vmatpush.msra.mxu0 0.0
    %342 = vmatpush.msra.mxu0 0.0
    %343 = vmatpush.msra.mxu0 0.0
    %344 = vmatpush.msra.mxu0 0.0
    %345 = vmatpush.msra.mxu0 0.0
    %346 = vmatpush.msra.mxu0 0.0
    %347 = vmatpush.msra.mxu0 0.0
    %348 = vmatpush.msra.mxu0 0.0
    %349 = vmatpush.msra.mxu0 0.0
    %350 = vmatpush.msra.mxu0 %v281
    %351 = vmatpush.msra.mxu0 %v280
    %352 = vmatpush.msra.mxu0 %v279
    %353 = vmatpush.msra.mxu0 %v278
    %354 = vmatmul.f32.gmra.mxu0 %v287
    %v355 = vpop.f32.mrf.mxu0
    %v356 = vadd.f32 0.0, %v355
    %357 = vmatmul.f32.gmra.mxu0 %v290
    %v358 = vpop.f32.mrf.mxu0
    %v359 = vadd.f32 0.0, %v358
    %360 = vdwg.mxu0
    %361 = vmatpush.msra.mxu0 0.0
    %362 = vmatpush.msra.mxu0 0.0
    %363 = vmatpush.msra.mxu0 0.0
    %364 = vmatpush.msra.mxu0 0.0
    %365 = vmatpush.msra.mxu0 0.0
    %366 = vmatpush.msra.mxu0 0.0
    %367 = vmatpush.msra.mxu0 0.0
    %368 = vmatpush.msra.mxu0 0.0
    %369 = vmatpush.msra.mxu0 0.0
    %370 = vmatpush.msra.mxu0 0.0
    %371 = vmatpush.msra.mxu0 0.0
    %372 = vmatpush.msra.mxu0 0.0
    %373 = vmatpush.msra.mxu0 %v285
    %374 = vmatpush.msra.mxu0 %v284
    %375 = vmatpush.msra.mxu0 %v283
    %376 = vmatpush.msra.mxu0 %v282
    %377 = vmatmul.f32.gmra.mxu0 %v287
    %v378 = vpop.f32.mrf.mxu0
    %v379 = vadd.f32 0.0, %v378
    %380 = vmatmul.f32.gmra.mxu0 %v290
    %v381 = vpop.f32.mrf.mxu0
    %v382 = vadd.f32 0.0, %v381
    %383 = vdwg.mxu0
    %vm384 = vcmask 64512
    %v386 = vsel %vm384, %v82, 0
    %v389 = vsel %vm384, %v196, 0
    %391 = vmatpush.xpose.msra.mxu0 0.0
    %392 = vmatpush.xpose.msra.mxu0 0.0
    %393 = vmatpush.xpose.msra.mxu0 0.0
    %394 = vmatpush.xpose.msra.mxu0 0.0
    %395 = vmatpush.xpose.msra.mxu0 0.0
    %396 = vmatpush.xpose.msra.mxu0 0.0
    %397 = vmatpush.xpose.msra.mxu0 0.0
    %398 = vmatpush.xpose.msra.mxu0 0.0
    %399 = vmatpush.xpose.msra.mxu0 0.0
    %400 = vmatpush.xpose.msra.mxu0 0.0
    %401 = vmatpush.xpose.msra.mxu0 0.0
    %402 = vmatpush.xpose.msra.mxu0 0.0
    %403 = vmatpush.xpose.msra.mxu0 0.0
    %404 = vmatpush.xpose.msra.mxu0 0.0
    %405 = vmatpush.xpose.msra.mxu0 0.0
    %406 = vmatpush.xpose.msra.mxu0 %v389
    %407 = vmatmul.f32.gmra.mxu0 %v386
    %v408 = vpop.f32.mrf.mxu0
    %v409 = vadd.f32 0.0, %v408
    %410 = vdwg.mxu0
    %v412 = vsel %vm384, %v85, 0
    %v415 = vsel %vm384, %v199, 0
    %417 = vmatpush.xpose.msra.mxu0 0.0
    %418 = vmatpush.xpose.msra.mxu0 0.0
    %419 = vmatpush.xpose.msra.mxu0 0.0
    %420 = vmatpush.xpose.msra.mxu0 0.0
    %421 = vmatpush.xpose.msra.mxu0 0.0
    %422 = vmatpush.xpose.msra.mxu0 0.0
    %423 = vmatpush.xpose.msra.mxu0 0.0
    %424 = vmatpush.xpose.msra.mxu0 0.0
    %425 = vmatpush.xpose.msra.mxu0 0.0
    %426 = vmatpush.xpose.msra.mxu0 0.0
    %427 = vmatpush.xpose.msra.mxu0 0.0
    %428 = vmatpush.xpose.msra.mxu0 0.0
    %429 = vmatpush.xpose.msra.mxu0 0.0
    %430 = vmatpush.xpose.msra.mxu0 0.0
    %431 = vmatpush.xpose.msra.mxu0 0.0
    %432 = vmatpush.xpose.msra.mxu0 %v415
    %433 = vmatmul.f32.gmra.mxu0 %v412
    %v434 = vpop.f32.mrf.mxu0
    %v435 = vadd.f32 0.0, %v434
    %436 = vdwg.mxu0
    %v438 = vsel %vm384, %v105, 0
    %v441 = vsel %vm384, %v219, 0
    %443 = vmatpush.xpose.msra.mxu0 0.0
    %444 = vmatpush.xpose.msra.mxu0 0.0
    %445 = vmatpush.xpose.msra.mxu0 0.0
    %446 = vmatpush.xpose.msra.mxu0 0.0
    %447 = vmatpush.xpose.msra.mxu0 0.0
    %448 = vmatpush.xpose.msra.mxu0 0.0
    %449 = vmatpush.xpose.msra.mxu0 0.0
    %450 = vmatpush.xpose.msra.mxu0 0.0
    %451 = vmatpush.xpose.msra.mxu0 0.0
    %452 = vmatpush.xpose.msra.mxu0 0.0
    %453 = vmatpush.xpose.msra.mxu0 0.0
    %454 = vmatpush.xpose.msra.mxu0 0.0
    %455 = vmatpush.xpose.msra.mxu0 0.0
    %456 = vmatpush.xpose.msra.mxu0 0.0
    %457 = vmatpush.xpose.msra.mxu0 0.0
    %458 = vmatpush.xpose.msra.mxu0 %v441
    %459 = vmatmul.f32.gmra.mxu0 %v438
    %v460 = vpop.f32.mrf.mxu0
    %v461 = vadd.f32 0.0, %v460
    %462 = vdwg.mxu0
    %v464 = vsel %vm384, %v108, 0
    %v467 = vsel %vm384, %v222, 0
    %469 = vmatpush.xpose.msra.mxu0 0.0
    %470 = vmatpush.xpose.msra.mxu0 0.0
    %471 = vmatpush.xpose.msra.mxu0 0.0
    %472 = vmatpush.xpose.msra.mxu0 0.0
    %473 = vmatpush.xpose.msra.mxu0 0.0
    %474 = vmatpush.xpose.msra.mxu0 0.0
    %475 = vmatpush.xpose.msra.mxu0 0.0
    %476 = vmatpush.xpose.msra.mxu0 0.0
    %477 = vmatpush.xpose.msra.mxu0 0.0
    %478 = vmatpush.xpose.msra.mxu0 0.0
    %479 = vmatpush.xpose.msra.mxu0 0.0
    %480 = vmatpush.xpose.msra.mxu0 0.0
    %481 = vmatpush.xpose.msra.mxu0 0.0
    %482 = vmatpush.xpose.msra.mxu0 0.0
    %483 = vmatpush.xpose.msra.mxu0 0.0
    %484 = vmatpush.xpose.msra.mxu0 %v467
    %485 = vmatmul.f32.gmra.mxu0 %v464
    %v486 = vpop.f32.mrf.mxu0
    %v487 = vadd.f32 0.0, %v486
    %488 = vdwg.mxu0
    %v490 = vsel %vm384, %v128, 0
    %v493 = vsel %vm384, %v242, 0
    %495 = vmatpush.xpose.msra.mxu0 0.0
    %496 = vmatpush.xpose.msra.mxu0 0.0
    %497 = vmatpush.xpose.msra.mxu0 0.0
    %498 = vmatpush.xpose.msra.mxu0 0.0
    %499 = vmatpush.xpose.msra.mxu0 0.0
    %500 = vmatpush.xpose.msra.mxu0 0.0
    %501 = vmatpush.xpose.msra.mxu0 0.0
    %502 = vmatpush.xpose.msra.mxu0 0.0
    %503 = vmatpush.xpose.msra.mxu0 0.0
    %504 = vmatpush.xpose.msra.mxu0 0.0
    %505 = vmatpush.xpose.msra.mxu0 0.0
    %506 = vmatpush.xpose.msra.mxu0 0.0
    %507 = vmatpush.xpose.msra.mxu0 0.0
    %508 = vmatpush.xpose.msra.mxu0 0.0
    %509 = vmatpush.xpose.msra.mxu0 0.0
    %510 = vmatpush.xpose.msra.mxu0 %v493
    %511 = vmatmul.f32.gmra.mxu0 %v490
    %v512 = vpop.f32.mrf.mxu0
    %v513 = vadd.f32 0.0, %v512
    %514 = vdwg.mxu0
    %v516 = vsel %vm384, %v131, 0
    %v519 = vsel %vm384, %v245, 0
    %521 = vmatpush.xpose.msra.mxu0 0.0
    %522 = vmatpush.xpose.msra.mxu0 0.0
    %523 = vmatpush.xpose.msra.mxu0 0.0
    %524 = vmatpush.xpose.msra.mxu0 0.0
    %525 = vmatpush.xpose.msra.mxu0 0.0
    %526 = vmatpush.xpose.msra.mxu0 0.0
    %527 = vmatpush.xpose.msra.mxu0 0.0
    %528 = vmatpush.xpose.msra.mxu0 0.0
    %529 = vmatpush.xpose.msra.mxu0 0.0
    %530 = vmatpush.xpose.msra.mxu0 0.0
    %531 = vmatpush.xpose.msra.mxu0 0.0
    %532 = vmatpush.xpose.msra.mxu0 0.0
    %533 = vmatpush.xpose.msra.mxu0 0.0
    %534 = vmatpush.xpose.msra.mxu0 0.0
    %535 = vmatpush.xpose.msra.mxu0 0.0
    %536 = vmatpush.xpose.msra.mxu0 %v519
    %537 = vmatmul.f32.gmra.mxu0 %v516
    %v538 = vpop.f32.mrf.mxu0
    %v539 = vadd.f32 0.0, %v538
    %540 = vdwg.mxu0
    %v542 = vsel %vm384, %v151, 0
    %v545 = vsel %vm384, %v265, 0
    %547 = vmatpush.xpose.msra.mxu0 0.0
    %548 = vmatpush.xpose.msra.mxu0 0.0
    %549 = vmatpush.xpose.msra.mxu0 0.0
    %550 = vmatpush.xpose.msra.mxu0 0.0
    %551 = vmatpush.xpose.msra.mxu0 0.0
    %552 = vmatpush.xpose.msra.mxu0 0.0
    %553 = vmatpush.xpose.msra.mxu0 0.0
    %554 = vmatpush.xpose.msra.mxu0 0.0
    %555 = vmatpush.xpose.msra.mxu0 0.0
    %556 = vmatpush.xpose.msra.mxu0 0.0
    %557 = vmatpush.xpose.msra.mxu0 0.0
    %558 = vmatpush.xpose.msra.mxu0 0.0
    %559 = vmatpush.xpose.msra.mxu0 0.0
    %560 = vmatpush.xpose.msra.mxu0 0.0
    %561 = vmatpush.xpose.msra.mxu0 0.0
    %562 = vmatpush.xpose.msra.mxu0 %v545
    %563 = vmatmul.f32.gmra.mxu0 %v542
    %v564 = vpop.f32.mrf.mxu0
    %v565 = vadd.f32 0.0, %v564
    %566 = vdwg.mxu0
    %v568 = vsel %vm384, %v154, 0
    %v571 = vsel %vm384, %v268, 0
    %573 = vmatpush.xpose.msra.mxu0 0.0
    %574 = vmatpush.xpose.msra.mxu0 0.0
    %575 = vmatpush.xpose.msra.mxu0 0.0
    %576 = vmatpush.xpose.msra.mxu0 0.0
    %577 = vmatpush.xpose.msra.mxu0 0.0
    %578 = vmatpush.xpose.msra.mxu0 0.0
    %579 = vmatpush.xpose.msra.mxu0 0.0
    %580 = vmatpush.xpose.msra.mxu0 0.0
    %581 = vmatpush.xpose.msra.mxu0 0.0
    %582 = vmatpush.xpose.msra.mxu0 0.0
    %583 = vmatpush.xpose.msra.mxu0 0.0
    %584 = vmatpush.xpose.msra.mxu0 0.0
    %585 = vmatpush.xpose.msra.mxu0 0.0
    %586 = vmatpush.xpose.msra.mxu0 0.0
    %587 = vmatpush.xpose.msra.mxu0 0.0
    %588 = vmatpush.xpose.msra.mxu0 %v571
    %589 = vmatmul.f32.gmra.mxu0 %v568
    %v590 = vpop.f32.mrf.mxu0
    %v591 = vadd.f32 0.0, %v590
    %592 = vdwg.mxu0
    %v593 = vsel %vm384, %v409, -inf
    %594 = vmax.xlane.f32.xlu0 %v593
    %v595 = vpop.xlane.xlu0 %594
    %v596 = vsel %vm384, %v435, -inf
    %597 = vmax.xlane.f32.xlu0 %v596
    %v598 = vpop.xlane.xlu0 %597
    %v599 = vsel %vm384, %v461, -inf
    %600 = vmax.xlane.f32.xlu0 %v599
    %v601 = vpop.xlane.xlu0 %600
    %v602 = vsel %vm384, %v487, -inf
    %603 = vmax.xlane.f32.xlu0 %v602
    %v604 = vpop.xlane.xlu0 %603
    %v605 = vsel %vm384, %v513, -inf
    %606 = vmax.xlane.f32.xlu0 %v605
    %v607 = vpop.xlane.xlu0 %606
    %v608 = vsel %vm384, %v539, -inf
    %609 = vmax.xlane.f32.xlu0 %v608
    %v610 = vpop.xlane.xlu0 %609
    %v611 = vsel %vm384, %v565, -inf
    %612 = vmax.xlane.f32.xlu0 %v611
    %v613 = vpop.xlane.xlu0 %612
    %v614 = vsel %vm384, %v591, -inf
    %615 = vmax.xlane.f32.xlu0 %v614
    %v616 = vpop.xlane.xlu0 %615
    %v617 = vsub.f32 %v409, %v595
    %v618 = vsub.f32 %v435, %v598
    %v619 = vsub.f32 %v461, %v601
    %v620 = vsub.f32 %v487, %v604
    %v621 = vsub.f32 %v513, %v607
    %v622 = vsub.f32 %v539, %v610
    %v623 = vsub.f32 %v565, %v613
    %v624 = vsub.f32 %v591, %v616
    %v625 = vmul.f32 %v617, 1.442695
    %v626 = vpow.pop %v625
    %v627 = vmul.f32 %v618, 1.442695
    %v628 = vpow.pop %v627
    %v629 = vmul.f32 %v619, 1.442695
    %v630 = vpow.pop %v629
    %v631 = vmul.f32 %v620, 1.442695
    %v632 = vpow.pop %v631
    %v633 = vmul.f32 %v621, 1.442695
    %v634 = vpow.pop %v633
    %v635 = vmul.f32 %v622, 1.442695
    %v636 = vpow.pop %v635
    %v637 = vmul.f32 %v623, 1.442695
    %v638 = vpow.pop %v637
    %v639 = vmul.f32 %v624, 1.442695
    %v640 = vpow.pop %v639
    %v641 = vsel %vm384, %v626, 0.0
    %642 = vadd.xlane.f32.xlu0 %v641
    %v643 = vpop.xlane.xlu0 %642
    %v644 = vsel %vm384, %v628, 0.0
    %645 = vadd.xlane.f32.xlu0 %v644
    %v646 = vpop.xlane.xlu0 %645
    %v647 = vsel %vm384, %v630, 0.0
    %648 = vadd.xlane.f32.xlu0 %v647
    %v649 = vpop.xlane.xlu0 %648
    %v650 = vsel %vm384, %v632, 0.0
    %651 = vadd.xlane.f32.xlu0 %v650
    %v652 = vpop.xlane.xlu0 %651
    %v653 = vsel %vm384, %v634, 0.0
    %654 = vadd.xlane.f32.xlu0 %v653
    %v655 = vpop.xlane.xlu0 %654
    %v656 = vsel %vm384, %v636, 0.0
    %657 = vadd.xlane.f32.xlu0 %v656
    %v658 = vpop.xlane.xlu0 %657
    %v659 = vsel %vm384, %v638, 0.0
    %660 = vadd.xlane.f32.xlu0 %v659
    %v661 = vpop.xlane.xlu0 %660
    %v662 = vsel %vm384, %v640, 0.0
    %663 = vadd.xlane.f32.xlu0 %v662
    %v664 = vpop.xlane.xlu0 %663
    %v665 = vrcp.pop %v643
    %v666 = vrcp.pop %v646
    %v667 = vrcp.pop %v649
    %v668 = vrcp.pop %v652
    %v669 = vrcp.pop %v655
    %v670 = vrcp.pop %v658
    %v671 = vrcp.pop %v661
    %v672 = vrcp.pop %v664
    %v673 = vmul.f32 %v626, %v665
    %v674 = vmul.f32 %v628, %v666
    %v675 = vmul.f32 %v630, %v667
    %v676 = vmul.f32 %v632, %v668
    %v677 = vmul.f32 %v634, %v669
    %v678 = vmul.f32 %v636, %v670
    %v679 = vmul.f32 %v638, %v671
    %v680 = vmul.f32 %v640, %v672
    %681 = vst.msk [vmem:[%s10] sm:$0xff] %vm384, %v673
    %682 = vst.msk [vmem:[%s10 + $0x8] sm:$0xff] %vm384, %v674
    %683 = vst.msk [vmem:[%s10 + $0x10] sm:$0xff] %vm384, %v675
    %684 = vst.msk [vmem:[%s10 + $0x18] sm:$0xff] %vm384, %v676
    %685 = vst.msk [vmem:[%s10 + $0x20] sm:$0xff] %vm384, %v677
    %686 = vst.msk [vmem:[%s10 + $0x28] sm:$0xff] %vm384, %v678
    %687 = vst.msk [vmem:[%s10 + $0x30] sm:$0xff] %vm384, %v679
    %688 = vst.msk [vmem:[%s10 + $0x38] sm:$0xff] %vm384, %v680
    %v690 = vsel %vm384, %v673, 0
    %692 = vmatpush.msra.mxu0 0.0
    %693 = vmatpush.msra.mxu0 0.0
    %694 = vmatpush.msra.mxu0 0.0
    %695 = vmatpush.msra.mxu0 0.0
    %696 = vmatpush.msra.mxu0 0.0
    %697 = vmatpush.msra.mxu0 0.0
    %698 = vmatpush.msra.mxu0 0.0
    %699 = vmatpush.msra.mxu0 0.0
    %700 = vmatpush.msra.mxu0 0.0
    %701 = vmatpush.msra.mxu0 0.0
    %702 = vmatpush.msra.mxu0 0.0
    %703 = vmatpush.msra.mxu0 0.0
    %704 = vmatpush.msra.mxu0 0.0
    %705 = vmatpush.msra.mxu0 0.0
    %706 = vmatpush.msra.mxu0 0.0
    %707 = vmatpush.msra.mxu0 %v310
    %708 = vmatmul.f32.gmra.mxu0 %v690
    %v709 = vpop.f32.mrf.mxu0
    %v710 = vadd.f32 0.0, %v709
    %711 = vdwg.mxu0
    %v713 = vsel %vm384, %v674, 0
    %715 = vmatpush.msra.mxu0 0.0
    %716 = vmatpush.msra.mxu0 0.0
    %717 = vmatpush.msra.mxu0 0.0
    %718 = vmatpush.msra.mxu0 0.0
    %719 = vmatpush.msra.mxu0 0.0
    %720 = vmatpush.msra.mxu0 0.0
    %721 = vmatpush.msra.mxu0 0.0
    %722 = vmatpush.msra.mxu0 0.0
    %723 = vmatpush.msra.mxu0 0.0
    %724 = vmatpush.msra.mxu0 0.0
    %725 = vmatpush.msra.mxu0 0.0
    %726 = vmatpush.msra.mxu0 0.0
    %727 = vmatpush.msra.mxu0 0.0
    %728 = vmatpush.msra.mxu0 0.0
    %729 = vmatpush.msra.mxu0 0.0
    %730 = vmatpush.msra.mxu0 %v313
    %731 = vmatmul.f32.gmra.mxu0 %v713
    %v732 = vpop.f32.mrf.mxu0
    %v733 = vadd.f32 0.0, %v732
    %734 = vdwg.mxu0
    %v736 = vsel %vm384, %v675, 0
    %738 = vmatpush.msra.mxu0 0.0
    %739 = vmatpush.msra.mxu0 0.0
    %740 = vmatpush.msra.mxu0 0.0
    %741 = vmatpush.msra.mxu0 0.0
    %742 = vmatpush.msra.mxu0 0.0
    %743 = vmatpush.msra.mxu0 0.0
    %744 = vmatpush.msra.mxu0 0.0
    %745 = vmatpush.msra.mxu0 0.0
    %746 = vmatpush.msra.mxu0 0.0
    %747 = vmatpush.msra.mxu0 0.0
    %748 = vmatpush.msra.mxu0 0.0
    %749 = vmatpush.msra.mxu0 0.0
    %750 = vmatpush.msra.mxu0 0.0
    %751 = vmatpush.msra.mxu0 0.0
    %752 = vmatpush.msra.mxu0 0.0
    %753 = vmatpush.msra.mxu0 %v333
    %754 = vmatmul.f32.gmra.mxu0 %v736
    %v755 = vpop.f32.mrf.mxu0
    %v756 = vadd.f32 0.0, %v755
    %757 = vdwg.mxu0
    %v759 = vsel %vm384, %v676, 0
    %761 = vmatpush.msra.mxu0 0.0
    %762 = vmatpush.msra.mxu0 0.0
    %763 = vmatpush.msra.mxu0 0.0
    %764 = vmatpush.msra.mxu0 0.0
    %765 = vmatpush.msra.mxu0 0.0
    %766 = vmatpush.msra.mxu0 0.0
    %767 = vmatpush.msra.mxu0 0.0
    %768 = vmatpush.msra.mxu0 0.0
    %769 = vmatpush.msra.mxu0 0.0
    %770 = vmatpush.msra.mxu0 0.0
    %771 = vmatpush.msra.mxu0 0.0
    %772 = vmatpush.msra.mxu0 0.0
    %773 = vmatpush.msra.mxu0 0.0
    %774 = vmatpush.msra.mxu0 0.0
    %775 = vmatpush.msra.mxu0 0.0
    %776 = vmatpush.msra.mxu0 %v336
    %777 = vmatmul.f32.gmra.mxu0 %v759
    %v778 = vpop.f32.mrf.mxu0
    %v779 = vadd.f32 0.0, %v778
    %780 = vdwg.mxu0
    %v782 = vsel %vm384, %v677, 0
    %784 = vmatpush.msra.mxu0 0.0
    %785 = vmatpush.msra.mxu0 0.0
    %786 = vmatpush.msra.mxu0 0.0
    %787 = vmatpush.msra.mxu0 0.0
    %788 = vmatpush.msra.mxu0 0.0
    %789 = vmatpush.msra.mxu0 0.0
    %790 = vmatpush.msra.mxu0 0.0
    %791 = vmatpush.msra.mxu0 0.0
    %792 = vmatpush.msra.mxu0 0.0
    %793 = vmatpush.msra.mxu0 0.0
    %794 = vmatpush.msra.mxu0 0.0
    %795 = vmatpush.msra.mxu0 0.0
    %796 = vmatpush.msra.mxu0 0.0
    %797 = vmatpush.msra.mxu0 0.0
    %798 = vmatpush.msra.mxu0 0.0
    %799 = vmatpush.msra.mxu0 %v356
    %800 = vmatmul.f32.gmra.mxu0 %v782
    %v801 = vpop.f32.mrf.mxu0
    %v802 = vadd.f32 0.0, %v801
    %803 = vdwg.mxu0
    %v805 = vsel %vm384, %v678, 0
    %807 = vmatpush.msra.mxu0 0.0
    %808 = vmatpush.msra.mxu0 0.0
    %809 = vmatpush.msra.mxu0 0.0
    %810 = vmatpush.msra.mxu0 0.0
    %811 = vmatpush.msra.mxu0 0.0
    %812 = vmatpush.msra.mxu0 0.0
    %813 = vmatpush.msra.mxu0 0.0
    %814 = vmatpush.msra.mxu0 0.0
    %815 = vmatpush.msra.mxu0 0.0
    %816 = vmatpush.msra.mxu0 0.0
    %817 = vmatpush.msra.mxu0 0.0
    %818 = vmatpush.msra.mxu0 0.0
    %819 = vmatpush.msra.mxu0 0.0
    %820 = vmatpush.msra.mxu0 0.0
    %821 = vmatpush.msra.mxu0 0.0
    %822 = vmatpush.msra.mxu0 %v359
    %823 = vmatmul.f32.gmra.mxu0 %v805
    %v824 = vpop.f32.mrf.mxu0
    %v825 = vadd.f32 0.0, %v824
    %826 = vdwg.mxu0
    %v828 = vsel %vm384, %v679, 0
    %830 = vmatpush.msra.mxu0 0.0
    %831 = vmatpush.msra.mxu0 0.0
    %832 = vmatpush.msra.mxu0 0.0
    %833 = vmatpush.msra.mxu0 0.0
    %834 = vmatpush.msra.mxu0 0.0
    %835 = vmatpush.msra.mxu0 0.0
    %836 = vmatpush.msra.mxu0 0.0
    %837 = vmatpush.msra.mxu0 0.0
    %838 = vmatpush.msra.mxu0 0.0
    %839 = vmatpush.msra.mxu0 0.0
    %840 = vmatpush.msra.mxu0 0.0
    %841 = vmatpush.msra.mxu0 0.0
    %842 = vmatpush.msra.mxu0 0.0
    %843 = vmatpush.msra.mxu0 0.0
    %844 = vmatpush.msra.mxu0 0.0
    %845 = vmatpush.msra.mxu0 %v379
    %846 = vmatmul.f32.gmra.mxu0 %v828
    %v847 = vpop.f32.mrf.mxu0
    %v848 = vadd.f32 0.0, %v847
    %849 = vdwg.mxu0
    %v851 = vsel %vm384, %v680, 0
    %853 = vmatpush.msra.mxu0 0.0
    %854 = vmatpush.msra.mxu0 0.0
    %855 = vmatpush.msra.mxu0 0.0
    %856 = vmatpush.msra.mxu0 0.0
    %857 = vmatpush.msra.mxu0 0.0
    %858 = vmatpush.msra.mxu0 0.0
    %859 = vmatpush.msra.mxu0 0.0
    %860 = vmatpush.msra.mxu0 0.0
    %861 = vmatpush.msra.mxu0 0.0
    %862 = vmatpush.msra.mxu0 0.0
    %863 = vmatpush.msra.mxu0 0.0
    %864 = vmatpush.msra.mxu0 0.0
    %865 = vmatpush.msra.mxu0 0.0
    %866 = vmatpush.msra.mxu0 0.0
    %867 = vmatpush.msra.mxu0 0.0
    %868 = vmatpush.msra.mxu0 %v382
    %869 = vmatmul.f32.gmra.mxu0 %v851
    %v870 = vpop.f32.mrf.mxu0
    %v871 = vadd.f32 0.0, %v870
    %872 = vdwg.mxu0
    %v873 = vld [vmem:[%s6] sm:$0xff]
    %v874 = vld [vmem:[%s6 + $0x8] sm:$0xff]
    %v875 = vld [vmem:[%s6 + $0x10] sm:$0xff]
    %v876 = vld [vmem:[%s6 + $0x18] sm:$0xff]
    %v878 = vsel %vm384, %v710, 0
    %v881 = vsel %vm384, %v733, 0
    %883 = vmatpush.msra.mxu0 0.0
    %884 = vmatpush.msra.mxu0 0.0
    %885 = vmatpush.msra.mxu0 0.0
    %886 = vmatpush.msra.mxu0 0.0
    %887 = vmatpush.msra.mxu0 0.0
    %888 = vmatpush.msra.mxu0 0.0
    %889 = vmatpush.msra.mxu0 0.0
    %890 = vmatpush.msra.mxu0 0.0
    %891 = vmatpush.msra.mxu0 0.0
    %892 = vmatpush.msra.mxu0 0.0
    %893 = vmatpush.msra.mxu0 0.0
    %894 = vmatpush.msra.mxu0 0.0
    %895 = vmatpush.msra.mxu0 0.0
    %896 = vmatpush.msra.mxu0 0.0
    %897 = vmatpush.msra.mxu0 0.0
    %898 = vmatpush.msra.mxu0 %v873
    %899 = vmatmul.f32.gmra.mxu0 %v878
    %v900 = vpop.f32.mrf.mxu0
    %v901 = vadd.f32 0.0, %v900
    %902 = vmatmul.f32.gmra.mxu0 %v881
    %v903 = vpop.f32.mrf.mxu0
    %v904 = vadd.f32 0.0, %v903
    %905 = vdwg.mxu0
    %v907 = vsel %vm384, %v756, 0
    %v910 = vsel %vm384, %v779, 0
    %912 = vmatpush.msra.mxu0 0.0
    %913 = vmatpush.msra.mxu0 0.0
    %914 = vmatpush.msra.mxu0 0.0
    %915 = vmatpush.msra.mxu0 0.0
    %916 = vmatpush.msra.mxu0 0.0
    %917 = vmatpush.msra.mxu0 0.0
    %918 = vmatpush.msra.mxu0 0.0
    %919 = vmatpush.msra.mxu0 0.0
    %920 = vmatpush.msra.mxu0 0.0
    %921 = vmatpush.msra.mxu0 0.0
    %922 = vmatpush.msra.mxu0 0.0
    %923 = vmatpush.msra.mxu0 0.0
    %924 = vmatpush.msra.mxu0 0.0
    %925 = vmatpush.msra.mxu0 0.0
    %926 = vmatpush.msra.mxu0 0.0
    %927 = vmatpush.msra.mxu0 %v874
    %928 = vmatmul.f32.gmra.mxu0 %v907
    %v929 = vpop.f32.mrf.mxu0
    %v930 = vadd.f32 0.0, %v929
    %931 = vmatmul.f32.gmra.mxu0 %v910
    %v932 = vpop.f32.mrf.mxu0
    %v933 = vadd.f32 0.0, %v932
    %934 = vdwg.mxu0
    %v936 = vsel %vm384, %v802, 0
    %v939 = vsel %vm384, %v825, 0
    %941 = vmatpush.msra.mxu0 0.0
    %942 = vmatpush.msra.mxu0 0.0
    %943 = vmatpush.msra.mxu0 0.0
    %944 = vmatpush.msra.mxu0 0.0
    %945 = vmatpush.msra.mxu0 0.0
    %946 = vmatpush.msra.mxu0 0.0
    %947 = vmatpush.msra.mxu0 0.0
    %948 = vmatpush.msra.mxu0 0.0
    %949 = vmatpush.msra.mxu0 0.0
    %950 = vmatpush.msra.mxu0 0.0
    %951 = vmatpush.msra.mxu0 0.0
    %952 = vmatpush.msra.mxu0 0.0
    %953 = vmatpush.msra.mxu0 0.0
    %954 = vmatpush.msra.mxu0 0.0
    %955 = vmatpush.msra.mxu0 0.0
    %956 = vmatpush.msra.mxu0 %v875
    %957 = vmatmul.f32.gmra.mxu0 %v936
    %v958 = vpop.f32.mrf.mxu0
    %v959 = vadd.f32 0.0, %v958
    %960 = vmatmul.f32.gmra.mxu0 %v939
    %v961 = vpop.f32.mrf.mxu0
    %v962 = vadd.f32 0.0, %v961
    %963 = vdwg.mxu0
    %v965 = vsel %vm384, %v848, 0
    %v968 = vsel %vm384, %v871, 0
    %970 = vmatpush.msra.mxu0 0.0
    %971 = vmatpush.msra.mxu0 0.0
    %972 = vmatpush.msra.mxu0 0.0
    %973 = vmatpush.msra.mxu0 0.0
    %974 = vmatpush.msra.mxu0 0.0
    %975 = vmatpush.msra.mxu0 0.0
    %976 = vmatpush.msra.mxu0 0.0
    %977 = vmatpush.msra.mxu0 0.0
    %978 = vmatpush.msra.mxu0 0.0
    %979 = vmatpush.msra.mxu0 0.0
    %980 = vmatpush.msra.mxu0 0.0
    %981 = vmatpush.msra.mxu0 0.0
    %982 = vmatpush.msra.mxu0 0.0
    %983 = vmatpush.msra.mxu0 0.0
    %984 = vmatpush.msra.mxu0 0.0
    %985 = vmatpush.msra.mxu0 %v876
    %986 = vmatmul.f32.gmra.mxu0 %v965
    %v987 = vpop.f32.mrf.mxu0
    %v988 = vadd.f32 0.0, %v987
    %989 = vmatmul.f32.gmra.mxu0 %v968
    %v990 = vpop.f32.mrf.mxu0
    %v991 = vadd.f32 0.0, %v990
    %992 = vdwg.mxu0
    %v993 = vsel %vm57, %v901, 0.0
    %v994 = vsel %vm57, %v930, 0.0
    %v995 = vadd.f32 %v993, %v994
    %v996 = vsel %vm57, %v959, 0.0
    %v997 = vadd.f32 %v995, %v996
    %v998 = vsel %vm57, %v988, 0.0
    %v999 = vadd.f32 %v997, %v998
    %v1000 = vsel %vm57, %v904, 0.0
    %v1001 = vsel %vm57, %v933, 0.0
    %v1002 = vadd.f32 %v1000, %v1001
    %v1003 = vsel %vm57, %v962, 0.0
    %v1004 = vadd.f32 %v1002, %v1003
    %v1005 = vsel %vm57, %v991, 0.0
    %v1006 = vadd.f32 %v1004, %v1005
    %v1007 = vadd.f32 %v999, %v35
    %v1008 = vadd.f32 %v1006, %v36
    %v1009 = vsel %vm57, %v1007, 0.0
    %1010 = vadd.xlane.f32.xlu0 %v1009
    %v1011 = vpop.xlane.xlu0 %1010
    %v1012 = vsel %vm57, %v1008, 0.0
    %1013 = vadd.xlane.f32.xlu0 %v1012
    %v1014 = vpop.xlane.xlu0 %1013
    %v1015 = vrcp.pop 32.0
    %v1016 = vmul.f32 32.0, %v1015
    %v1017 = vsub.f32 1.0, %v1016
    %v1018 = vmul.f32 %v1015, %v1017
    %v1019 = vadd.f32 %v1015, %v1018
    %vm1020 = vweird.f32 %v1015
    %v1021 = vsel %vm1020, %v1015, %v1019
    %v1022 = vmul.f32 %v1011, %v1021
    %v1023 = vmul.f32 %v1014, %v1021
    %v1024 = vsub.f32 %v1007, %v1022
    %v1025 = vsub.f32 %v1008, %v1023
    %v1026 = vmul.f32 %v1024, %v1024
    %v1027 = vmul.f32 %v1025, %v1025
    %v1028 = vsel %vm57, %v1026, 0.0
    %1029 = vadd.xlane.f32.xlu0 %v1028
    %v1030 = vpop.xlane.xlu0 %1029
    %v1031 = vsel %vm57, %v1027, 0.0
    %1032 = vadd.xlane.f32.xlu0 %v1031
    %v1033 = vpop.xlane.xlu0 %1032
    %v1034 = vmul.f32 %v1030, %v1021
    %v1035 = vmul.f32 %v1033, %v1021
    %v1036 = vadd.f32 %v1034, 1e-06
    %v1037 = vadd.f32 %v1035, 1e-06
    %v1038 = vrsqrt.pop %v1036
    %v1039 = vmul.f32 %v1038, %v1036
    %v1040 = vmul.f32 %v1039, %v1038
    %v1041 = vmul.f32 0.5, %v1040
    %v1042 = vsub.f32 1.5, %v1041
    %v1043 = vmul.f32 %v1038, %v1042
    %vm1044 = vweird.f32 %v1036
    %vm1045 = vweird.f32 %v1038
    %vm1046 = vmor %vm1044, %vm1045
    %v1047 = vsel %vm1046, %v1038, %v1043
    %v1048 = vrsqrt.pop %v1037
    %v1049 = vmul.f32 %v1048, %v1037
    %v1050 = vmul.f32 %v1049, %v1048
    %v1051 = vmul.f32 0.5, %v1050
    %v1052 = vsub.f32 1.5, %v1051
    %v1053 = vmul.f32 %v1048, %v1052
    %vm1054 = vweird.f32 %v1037
    %vm1055 = vweird.f32 %v1048
    %vm1056 = vmor %vm1054, %vm1055
    %v1057 = vsel %vm1056, %v1048, %v1053
    %v1058 = vmul.f32 %v1024, %v1047
    %v1059 = vmul.f32 %v1025, %v1057
    %v1060 = vld [vmem:[%s7] sm:$0x1]
    %v1062 = vperm.slane %v1060, 0
    %v1064 = vmul.f32 %v1058, %v1062
    %v1065 = vmul.f32 %v1059, %v1062
    %v1066 = vld [vmem:[%s8] sm:$0x1]
    %v1068 = vperm.slane %v1066, 0
    %v1070 = vadd.f32 %v1064, %v1068
    %v1071 = vadd.f32 %v1065, %v1068
    %1072 = vst.msk [vmem:[#allocation2] sm:$0xff] %vm57, %v1070
    %1073 = vst.msk [vmem:[#allocation2 + $0x8] sm:$0xff] %vm57, %v1071
    // Predicated region
    $region38: #{multi_head_attention.1} parent=1 // pred_check
      _
    $region39: #{multi_head_attention.1} parent=1 // pred_check_branch
      %1075 = sbr.rel (0) target = $region41
    $region40: #{multi_head_attention.1} parent=1 // pred_region
      %1077 = vsyncadd [#allocation3], 0
      %s1078 = sshll.u32 [#allocation2], 4
      %s1079 = int_to_ptr.vmem [resolvable:$true] %s1078
      %s1080 = sshll.u32 %s9, 4
      %s1081 = int_to_ptr.hbm [resolvable:$true] %s1080
      %1086 = dma.vmem_to_hbm [thread:$0]  %s1079, 256, %s1081, [#allocation3], 128, 128, 8
    $region41: #{multi_head_attention.1} parent=1 // pred_fallthru
      _
    // Predicated region
    $region42: #{multi_head_attention.1} parent=1 // pred_check
      _
    $region43: #{multi_head_attention.1} parent=1 // pred_check_branch
      %1088 = sbr.rel (0) target = $region45
    $region44: #{multi_head_attention.1} parent=1 // pred_region
      _
    $region45: #{multi_head_attention.1} parent=1 // pred_fallthru
      _
    // Predicated region
    $region46: #{multi_head_attention.1} parent=1 // pred_check
      _
    $region47: #{multi_head_attention.1} parent=1 // pred_check_branch
      %1090 = sbr.rel (0) target = $region49
    $region48: #{multi_head_attention.1} parent=1 // pred_region
      %1092 = dma.done [#allocation3], 256
    $region49: #{multi_head_attention.1} parent=1 // pred_fallthru
      _
    // Predicated region
    $region50: #{multi_head_attention.1} parent=1 // pred_check
      _
    $region51: #{multi_head_attention.1} parent=1 // pred_check_branch
      %1094 = sbr.rel (0) target = $region53
    $region52: #{multi_head_attention.1} parent=1 // pred_region
      _
    $region53: #{multi_head_attention.1} parent=1 // pred_fallthru
      _
    %1095 = vsyncpa [#allocation3], 1

</llo_original>
